<compile_context>
chip_gen: v7x
topology: tpu7x:2x2x1
jax: 0.10.0
libtpu: 0.0.40
codegen_flags: <defaults>
</compile_context>

<pallas_src>
import jax
import jax.numpy as jnp
from jax.experimental import pallas as pl
from jax.experimental.pallas import tpu as pltpu

_LANE = 128         # lane width (last-dim alignment)
_SUBLANE = 8        # sublane height (second-to-last-dim alignment)
_BATCH_BLOCK = 128  # MXU-row tile: multiple of 128 suits v5e (4x128^2) and v6e/v7x (2x256^2)
_NEG_INF = -1e30


def _round_up(n, m):
    return ((n + m - 1) // m) * m


def _mlp_softmax_kernel(x_ref, w1_ref, b1_ref, w2_ref, b2_ref, w3_ref, b3_ref, o_ref):
    # fc1 + relu: bf16 MXU inputs, f32 accumulation; bias/ReLU stay f32.
    h1 = jnp.dot(x_ref[...], w1_ref[...], preferred_element_type=jnp.float32) + b1_ref[...]
    h1 = jnp.maximum(h1, 0.0)
    # fc2 + relu
    h2 = jnp.dot(h1.astype(jnp.bfloat16), w2_ref[...],
                 preferred_element_type=jnp.float32) + b2_ref[...]
    h2 = jnp.maximum(h2, 0.0)
    # out layer; padded action columns carry a -1e30 bias -> exp() underflows to exactly 0
    logits = jnp.dot(h2.astype(jnp.bfloat16), w3_ref[...],
                     preferred_element_type=jnp.float32) + b3_ref[...]
    # numerically-stable softmax over the lane-dense (padded) action axis
    m = jnp.max(logits, axis=1, keepdims=True)
    e = jnp.exp(logits - m)
    denom = jnp.sum(e, axis=1, keepdims=True)
    # Exact divide: downstream categorical sampling / log-probs want exactly-normalized
    # rows, and the approx reciprocal bought ~0 wall time at this size.
    o_ref[...] = (e / denom).astype(o_ref.dtype)


def pad_params(params, state_size, action_size):
    """Pad + cast weights ONCE (at init time).

    * state (contraction) dim pads only to the 8-sublane minimum, NOT 128.
    * hidden/action dims pad to 128 lanes (lane-dense matmuls and output store).
    * zero padding is numerically transparent through matmul + bias + ReLU.
    * padded logit columns get a -1e30 bias so they vanish from the softmax.
    * weights stored bf16 (native MXU input dtype, half the DMA bytes); biases stay f32.
    """
    s_pad = _round_up(state_size, _SUBLANE)
    h1_pad = _round_up(50, _LANE)
    h2_pad = _round_up(100, _LANE)
    a_pad = _round_up(action_size, _LANE)

    def pad_w(w, rows, cols):
        r, c = w.shape
        return jnp.pad(w, ((0, rows - r), (0, cols - c))).astype(jnp.bfloat16)

    def pad_b(b, cols, fill=0.0):
        c = b.shape[1]
        return jnp.pad(b, ((0, 0), (0, cols - c)), constant_values=fill).astype(jnp.float32)

    return {
        "w1": pad_w(params["w1"], s_pad, h1_pad),
        "b1": pad_b(params["b1"], h1_pad),
        "w2": pad_w(params["w2"], h1_pad, h2_pad),
        "b2": pad_b(params["b2"], h2_pad),
        "w3": pad_w(params["w3"], h2_pad, a_pad),
        "b3": pad_b(params["b3"], a_pad, fill=_NEG_INF),  # mask padded actions
    }


def simple_dnn_forward(x, padded_params, action_size, *, return_padded=False):
    """x: (B, state_size) f32. padded_params: output of pad_params().

    Returns (B, action_size) probabilities, or the padded (B_pad, 128) block when
    return_padded=True (padded action lanes are exactly 0, so argmax / categorical
    sampling can consume it directly and the non-lane-dense slice leaves the hot loop).
    """
    B, S = x.shape
    w1, b1 = padded_params["w1"], padded_params["b1"]
    w2, b2 = padded_params["w2"], padded_params["b2"]
    w3, b3 = padded_params["w3"], padded_params["b3"]
    s_pad, h1_pad = w1.shape
    h2_pad, a_pad = w3.shape

    # Round the batch up to whole MXU-row tiles; extra rows are zeros and sliced away.
    b_pad = _round_up(max(B, 1), _BATCH_BLOCK)
    # TODO(synk): in a steady-state RL loop, write env states into a persistent
    # pre-padded (b_pad, s_pad) bf16 buffer instead of padding/casting per call.
    x_pad = jnp.pad(x, ((0, b_pad - B), (0, s_pad - S))).astype(jnp.bfloat16)

    grid = (b_pad // _BATCH_BLOCK,)
    const = lambda i: (0, 0)  # weights/biases: staged into VMEM once per call

    # TODO(synk): for a steady-state inference loop, keep the ~66 KB of bf16 weights
    # resident in VMEM across calls (P10 cross-call VMEM/semaphore outputs) instead of
    # re-staging them every step; per-step cost here is launch+DMA latency, not compute.
    out_pad = pl.pallas_call(
        _mlp_softmax_kernel,
        out_shape=jax.ShapeDtypeStruct((b_pad, a_pad), jnp.float32),
        grid=grid,
        in_specs=[
            pl.BlockSpec((_BATCH_BLOCK, s_pad), lambda i: (i, 0)),
            pl.BlockSpec((s_pad, h1_pad), const),
            pl.BlockSpec((1, h1_pad), const),
            pl.BlockSpec((h1_pad, h2_pad), const),
            pl.BlockSpec((1, h2_pad), const),
            pl.BlockSpec((h2_pad, a_pad), const),
            pl.BlockSpec((1, a_pad), const),
        ],
        out_specs=pl.BlockSpec((_BATCH_BLOCK, a_pad), lambda i: (i, 0)),
        compiler_params=pltpu.CompilerParams(
            dimension_semantics=("parallel",)),  # v7x: batch blocks across both TCs
    )(x_pad, w1, b1, w2, b2, w3, b3)

    if return_padded:
        return out_pad
    return out_pad[:B, :action_size]


def init_params(key, state_size, action_size):
    """Deterministic synthetic init (PyTorch-Linear-like uniform bounds), f32 master copy."""
    ks = jax.random.split(key, 6)

    def lin(kw, kb, fan_in, fan_out):
        bound = 1.0 / jnp.sqrt(fan_in)
        w = jax.random.uniform(kw, (fan_in, fan_out), jnp.float32, -bound, bound)
        b = jax.random.uniform(kb, (1, fan_out), jnp.float32, -bound, bound)
        return w, b

    w1, b1 = lin(ks[0], ks[1], state_size, 50)
    w2, b2 = lin(ks[2], ks[3], 50, 100)
    w3, b3 = lin(ks[4], ks[5], 100, action_size)
    return {"w1": w1, "b1": b1, "w2": w2, "b2": b2, "w3": w3, "b3": b3}


def reference_forward_bf16(x, params):
    """Pure-JAX reference emulating the kernel numerics (bf16 MXU inputs, f32 accum)."""
    bf = jnp.bfloat16
    mm = lambda a, w: jnp.dot(a.astype(bf), w.astype(bf), preferred_element_type=jnp.float32)
    h1 = jnp.maximum(mm(x, params["w1"]) + params["b1"], 0.0)
    h2 = jnp.maximum(mm(h1, params["w2"]) + params["b2"], 0.0)
    return jax.nn.softmax(mm(h2, params["w3"]) + params["b3"], axis=1)


if __name__ == "__main__":
    key = jax.random.PRNGKey(0)
    k_x, k_p = jax.random.split(key)

    # Batch many env states per call: fills MXU rows (128-multiple suits v5e and
    # v6e/v7x) and amortizes the launch/DMA latency that dominates at this model size.
    batch = 128
    state_size = 8
    action_size = 3

    x = jax.random.normal(k_x, (batch, state_size), jnp.float32)
    params = init_params(k_p, state_size, action_size)
    padded = pad_params(params, state_size, action_size)   # pad + bf16-cast once at init

    out = simple_dnn_forward(x, padded, action_size)
    out = jax.block_until_ready(out)
    assert out.shape == (batch, action_size)

    # Rows sum to 1 to f32 precision (exact divide; padded action lanes are exactly 0).
    assert jnp.allclose(jnp.sum(out, axis=1), 1.0, atol=1e-5)

    # Match a pure-JAX reference using the same bf16-input / f32-accum numerics.
    ref_bf16 = reference_forward_bf16(x, params)
    assert jnp.allclose(out, ref_bf16, atol=2e-3)

    # Sanity vs. the full-f32 PyTorch-equivalent forward (loose: bf16 weight/act error).
    h1 = jnp.maximum(x @ params["w1"] + params["b1"], 0.0)
    h2 = jnp.maximum(h1 @ params["w2"] + params["b2"], 0.0)
    ref_f32 = jax.nn.softmax(h2 @ params["w3"] + params["b3"], axis=1)
    assert jnp.allclose(out, ref_f32, atol=5e-2)

    print("KERNEL_OK")
</pallas_src>

<mosaic_0001>
module attributes {stable_mosaic.version = 11 : i64} {
  func.func @_mlp_softmax_kernel(%arg0: i32, %arg1: memref<128x8xbf16, #tpu.memory_space<vmem>>, %arg2: memref<8x128xbf16, #tpu.memory_space<vmem>>, %arg3: memref<1x128xf32, #tpu.memory_space<vmem>>, %arg4: memref<128x128xbf16, #tpu.memory_space<vmem>>, %arg5: memref<1x128xf32, #tpu.memory_space<vmem>>, %arg6: memref<128x128xbf16, #tpu.memory_space<vmem>>, %arg7: memref<1x128xf32, #tpu.memory_space<vmem>>, %arg8: memref<128x128xf32, #tpu.memory_space<vmem>>) attributes {dimension_semantics = [#tpu.dimension_semantics<parallel>], iteration_bounds = array<i64: 1>, scalar_prefetch = 0 : i64, scratch_operands = 0 : i64, tpu.core_type = #tpu.core_type<tc>, window_params = [{transform_indices = @transform_0, window_bounds = array<i64: 128, 8>}, {pipeline_mode = #tpu.pipeline_mode<synchronous>, transform_indices = @transform_1, window_bounds = array<i64: 8, 128>}, {pipeline_mode = #tpu.pipeline_mode<synchronous>, transform_indices = @transform_2, window_bounds = array<i64: 1, 128>}, {pipeline_mode = #tpu.pipeline_mode<synchronous>, transform_indices = @transform_3, window_bounds = array<i64: 128, 128>}, {pipeline_mode = #tpu.pipeline_mode<synchronous>, transform_indices = @transform_4, window_bounds = array<i64: 1, 128>}, {pipeline_mode = #tpu.pipeline_mode<synchronous>, transform_indices = @transform_5, window_bounds = array<i64: 128, 128>}, {pipeline_mode = #tpu.pipeline_mode<synchronous>, transform_indices = @transform_6, window_bounds = array<i64: 1, 128>}, {transform_indices = @transform_7, window_bounds = array<i64: 128, 128>}]} {
    %c0 = arith.constant 0 : index
    %c0_0 = arith.constant 0 : index
    %0 = vector.load %arg1[%c0, %c0_0] : memref<128x8xbf16, #tpu.memory_space<vmem>>, vector<128x8xbf16>
    %c0_1 = arith.constant 0 : index
    %c0_2 = arith.constant 0 : index
    %1 = vector.load %arg2[%c0_1, %c0_2] : memref<8x128xbf16, #tpu.memory_space<vmem>>, vector<8x128xbf16>
    %cst = arith.constant dense<0.000000e+00> : vector<128x128xf32>
    %2 = tpu.matmul %0, %1, %cst {dimension_numbers = #tpu.dot_dimension_numbers<[1], [0], [0], [1], [0, 0, 1, 1], [], []>} : vector<128x8xbf16>, vector<8x128xbf16>, vector<128x128xf32> -> vector<128x128xf32>
    %c0_3 = arith.constant 0 : index
    %c0_4 = arith.constant 0 : index
    %3 = vector.load %arg3[%c0_3, %c0_4] : memref<1x128xf32, #tpu.memory_space<vmem>>, vector<1x128xf32>
    %4 = vector.broadcast %3 : vector<1x128xf32> to vector<128x128xf32>
    %5 = arith.addf %2, %4 : vector<128x128xf32>
    %cst_5 = arith.constant 0.000000e+00 : f32
    %6 = vector.broadcast %cst_5 : f32 to vector<128x128xf32>
    %7 = arith.maximumf %5, %6 : vector<128x128xf32>
    %8 = arith.truncf %7 : vector<128x128xf32> to vector<128x128xbf16>
    %c0_6 = arith.constant 0 : index
    %c0_7 = arith.constant 0 : index
    %9 = vector.load %arg4[%c0_6, %c0_7] : memref<128x128xbf16, #tpu.memory_space<vmem>>, vector<128x128xbf16>
    %cst_8 = arith.constant dense<0.000000e+00> : vector<128x128xf32>
    %10 = tpu.matmul %8, %9, %cst_8 {dimension_numbers = #tpu.dot_dimension_numbers<[1], [0], [0], [1], [0, 0, 1, 1], [], []>} : vector<128x128xbf16>, vector<128x128xbf16>, vector<128x128xf32> -> vector<128x128xf32>
    %c0_9 = arith.constant 0 : index
    %c0_10 = arith.constant 0 : index
    %11 = vector.load %arg5[%c0_9, %c0_10] : memref<1x128xf32, #tpu.memory_space<vmem>>, vector<1x128xf32>
    %12 = vector.broadcast %11 : vector<1x128xf32> to vector<128x128xf32>
    %13 = arith.addf %10, %12 : vector<128x128xf32>
    %cst_11 = arith.constant 0.000000e+00 : f32
    %14 = vector.broadcast %cst_11 : f32 to vector<128x128xf32>
    %15 = arith.maximumf %13, %14 : vector<128x128xf32>
    %16 = arith.truncf %15 : vector<128x128xf32> to vector<128x128xbf16>
    %c0_12 = arith.constant 0 : index
    %c0_13 = arith.constant 0 : index
    %17 = vector.load %arg6[%c0_12, %c0_13] : memref<128x128xbf16, #tpu.memory_space<vmem>>, vector<128x128xbf16>
    %cst_14 = arith.constant dense<0.000000e+00> : vector<128x128xf32>
    %18 = tpu.matmul %16, %17, %cst_14 {dimension_numbers = #tpu.dot_dimension_numbers<[1], [0], [0], [1], [0, 0, 1, 1], [], []>} : vector<128x128xbf16>, vector<128x128xbf16>, vector<128x128xf32> -> vector<128x128xf32>
    %c0_15 = arith.constant 0 : index
    %c0_16 = arith.constant 0 : index
    %19 = vector.load %arg7[%c0_15, %c0_16] : memref<1x128xf32, #tpu.memory_space<vmem>>, vector<1x128xf32>
    %20 = vector.broadcast %19 : vector<1x128xf32> to vector<128x128xf32>
    %21 = arith.addf %18, %20 : vector<128x128xf32>
    %cst_17 = arith.constant dense<0xFF800000> : vector<128xf32>
    %22 = vector.multi_reduction <maximumf>, %21, %cst_17 [1] : vector<128x128xf32> to vector<128xf32>
    %23 = vector.shape_cast %22 : vector<128xf32> to vector<128x1xf32>
    %24 = vector.broadcast %23 : vector<128x1xf32> to vector<128x128xf32>
    %25 = arith.subf %21, %24 : vector<128x128xf32>
    %26 = math.exp %25 : vector<128x128xf32>
    %cst_18 = arith.constant dense<0.000000e+00> : vector<128xf32>
    %27 = vector.multi_reduction <add>, %26, %cst_18 [1] : vector<128x128xf32> to vector<128xf32>
    %28 = vector.shape_cast %27 : vector<128xf32> to vector<128x1xf32>
    %29 = vector.broadcast %28 : vector<128x1xf32> to vector<128x128xf32>
    %30 = arith.divf %26, %29 : vector<128x128xf32>
    %c0_19 = arith.constant 0 : index
    %c0_20 = arith.constant 0 : index
    %31 = vector.load %arg8[%c0_19, %c0_20] : memref<128x128xf32, #tpu.memory_space<vmem>>, vector<128x128xf32>
    tpu.vector_store %arg8[%c0_19, %c0_20], %30 {strides = array<i32>} : memref<128x128xf32, #tpu.memory_space<vmem>>, vector<128x128xf32>,
    return
  }
  func.func @transform_0(%arg0: i32) -> (i32, i32) {
    %c0_i32 = arith.constant 0 : i32
    %c0_i32_0 = arith.constant 0 : i32
    return %arg0, %c0_i32 : i32, i32
  }
  func.func @transform_1(%arg0: i32) -> (i32, i32) {
    %c0_i32 = arith.constant 0 : i32
    %c0_i32_0 = arith.constant 0 : i32
    %c0_i32_1 = arith.constant 0 : i32
    return %c0_i32, %c0_i32_0 : i32, i32
  }
  func.func @transform_2(%arg0: i32) -> (i32, i32) {
    %c0_i32 = arith.constant 0 : i32
    %c0_i32_0 = arith.constant 0 : i32
    %c0_i32_1 = arith.constant 0 : i32
    return %c0_i32, %c0_i32_0 : i32, i32
  }
  func.func @transform_3(%arg0: i32) -> (i32, i32) {
    %c0_i32 = arith.constant 0 : i32
    %c0_i32_0 = arith.constant 0 : i32
    %c0_i32_1 = arith.constant 0 : i32
    return %c0_i32, %c0_i32_0 : i32, i32
  }
  func.func @transform_4(%arg0: i32) -> (i32, i32) {
    %c0_i32 = arith.constant 0 : i32
    %c0_i32_0 = arith.constant 0 : i32
    %c0_i32_1 = arith.constant 0 : i32
    return %c0_i32, %c0_i32_0 : i32, i32
  }
  func.func @transform_5(%arg0: i32) -> (i32, i32) {
    %c0_i32 = arith.constant 0 : i32
    %c0_i32_0 = arith.constant 0 : i32
    %c0_i32_1 = arith.constant 0 : i32
    return %c0_i32, %c0_i32_0 : i32, i32
  }
  func.func @transform_6(%arg0: i32) -> (i32, i32) {
    %c0_i32 = arith.constant 0 : i32
    %c0_i32_0 = arith.constant 0 : i32
    %c0_i32_1 = arith.constant 0 : i32
    return %c0_i32, %c0_i32_0 : i32, i32
  }
  func.func @transform_7(%arg0: i32) -> (i32, i32) {
    %c0_i32 = arith.constant 0 : i32
    %c0_i32_0 = arith.constant 0 : i32
    return %arg0, %c0_i32 : i32, i32
  }
}

</mosaic_0001>

<llo_original>
// kernel: tpu_custom_call.1
$region0: #{tpu_custom_call.1}
  #allocation0 [shape = 'u32[]', space=smem, size = 0x4, offset = 0x4, fixed_abs, tag = 'smem constant byte address 0x4 - core index']
  #allocation1 [shape = 'u32[144,128]{1,0:T(1,128)}', space=vmem, size = 0x12000, scoped, tag = 'internal scratch']
  %s0 = inlined_call_operand.vmem [shape: bf16[128,8], index: 0, kind: input, shape index: {}]
  %s1 = inlined_call_operand.vmem [shape: bf16[8,128], index: 1, kind: input, shape index: {}]
  %s2 = inlined_call_operand.vmem [shape: f32[1,128], index: 2, kind: input, shape index: {}]
  %s3 = inlined_call_operand.vmem [shape: bf16[128,128], index: 3, kind: input, shape index: {}]
  %s4 = inlined_call_operand.vmem [shape: f32[1,128], index: 4, kind: input, shape index: {}]
  %s5 = inlined_call_operand.hbm [shape: bf16[128,128], index: 5, kind: input, shape index: {}]
  %s6 = inlined_call_operand.vmem [shape: f32[1,128], index: 6, kind: input, shape index: {}]
  %s7 = inlined_call_operand.hbm [shape: f32[128,128], index: 7, kind: output, shape index: {}]
  %s8 = sld [smem:[#allocation0]]
  $region42: #{tpu_custom_call.1} parent=0
    _
  %s10 = ssub.s32 1, %s8
  %s11 = scalar_select 0, %s10, %s8
  $region1: #{tpu_custom_call.1} parent=0
    #allocation2 [shape = 'u8[32768]{0}', space=vmem, size = 0x8000, scoped, tag = 'input window, operand 5, single buffered']
    #allocation3 [shape = 's32[1]{0}', space=sflag, size = 0x4, scoped, tag = 'scoped memory for tpu_custom_call.1']
    #allocation4 [shape = 's32[1]{0}', space=sflag, size = 0x4, scoped, tag = 'scoped memory for tpu_custom_call.1']
    #allocation5 [shape = 'u8[65536]{0}', space=vmem, size = 0x10000, scoped, tag = 'output window, operand 0, single buffered']
    %12 = vsyncpa [#allocation3], 0
    %13 = vsyncpa [#allocation4], 0
    // Predicated region
    $region2: #{tpu_custom_call.1} parent=1 // pred_check
      _
    $region3: #{tpu_custom_call.1} parent=1 // pred_check_branch
      %15 = sbr.rel (0) target = $region5
    $region4: #{tpu_custom_call.1} parent=1 // pred_region
      _
    $region5: #{tpu_custom_call.1} parent=1 // pred_fallthru
      _
    // Predicated region
    $region6: #{tpu_custom_call.1} parent=1 // pred_check
      _
    $region7: #{tpu_custom_call.1} parent=1 // pred_check_branch
      %17 = sbr.rel (0) target = $region9
    $region8: #{tpu_custom_call.1} parent=1 // pred_region
      _
    $region9: #{tpu_custom_call.1} parent=1 // pred_fallthru
      _
    // Predicated region
    $region10: #{tpu_custom_call.1} parent=1 // pred_check
      _
    $region11: #{tpu_custom_call.1} parent=1 // pred_check_branch
      %19 = sbr.rel (0) target = $region13
    $region12: #{tpu_custom_call.1} parent=1 // pred_region
      _
    $region13: #{tpu_custom_call.1} parent=1 // pred_fallthru
      _
    // Predicated region
    $region14: #{tpu_custom_call.1} parent=1 // pred_check
      _
    $region15: #{tpu_custom_call.1} parent=1 // pred_check_branch
      %21 = sbr.rel (0) target = $region17
    $region16: #{tpu_custom_call.1} parent=1 // pred_region
      _
    $region17: #{tpu_custom_call.1} parent=1 // pred_fallthru
      _
    // Predicated region
    $region18: #{tpu_custom_call.1} parent=1 // pred_check
      _
    $region19: #{tpu_custom_call.1} parent=1 // pred_check_branch
      %23 = sbr.rel (0) target = $region21
    $region20: #{tpu_custom_call.1} parent=1 // pred_region
      _
    $region21: #{tpu_custom_call.1} parent=1 // pred_fallthru
      _
    // Predicated region
    $region22: #{tpu_custom_call.1} parent=1 // pred_check
      _
    $region23: #{tpu_custom_call.1} parent=1 // pred_check_branch
      %25 = sbr.rel (0) target = $region25
    $region24: #{tpu_custom_call.1} parent=1 // pred_region
      %s27 = ssub.s32 1024, 1024
      %28 = vsyncadd [#allocation3], %s27
      %s29 = sshll.u32 [#allocation2], 4
      %s30 = int_to_ptr.vmem [resolvable:$true] %s29
      %35 = dma.hbm_to_vmem [thread:$0]  %s5, 1024, %s30, [#allocation3], 64, 64, 4
    $region25: #{tpu_custom_call.1} parent=1 // pred_fallthru
      _
    // Predicated region
    $region26: #{tpu_custom_call.1} parent=1 // pred_check
      _
    $region27: #{tpu_custom_call.1} parent=1 // pred_check_branch
      %37 = sbr.rel (0) target = $region29
    $region28: #{tpu_custom_call.1} parent=1 // pred_region
      _
    $region29: #{tpu_custom_call.1} parent=1 // pred_fallthru
      _
    // Predicated region
    $region30: #{tpu_custom_call.1} parent=1 // pred_check
      _
    $region31: #{tpu_custom_call.1} parent=1 // pred_check_branch
      %39 = sbr.rel (0) target = $region33
    $region32: #{tpu_custom_call.1} parent=1 // pred_region
      %40 = dma.done [#allocation3], 1024
    $region33: #{tpu_custom_call.1} parent=1 // pred_fallthru
      _
    %v42 = vld [vmem:[%s0] sm:$0xf]
    %v43 = vld [vmem:[%s0 + $0x4] sm:$0xf]
    %v44 = vld [vmem:[%s0 + $0x8] sm:$0xf]
    %v45 = vld [vmem:[%s0 + $0xc] sm:$0xf]
    %v46 = vld [vmem:[%s0 + $0x10] sm:$0xf]
    %v47 = vld [vmem:[%s0 + $0x14] sm:$0xf]
    %v48 = vld [vmem:[%s0 + $0x18] sm:$0xf]
    %v49 = vld [vmem:[%s0 + $0x1c] sm:$0xf]
    %v50 = vld [vmem:[%s0 + $0x20] sm:$0xf]
    %v51 = vld [vmem:[%s0 + $0x24] sm:$0xf]
    %v52 = vld [vmem:[%s0 + $0x28] sm:$0xf]
    %v53 = vld [vmem:[%s0 + $0x2c] sm:$0xf]
    %v54 = vld [vmem:[%s0 + $0x30] sm:$0xf]
    %v55 = vld [vmem:[%s0 + $0x34] sm:$0xf]
    %v56 = vld [vmem:[%s0 + $0x38] sm:$0xf]
    %v57 = vld [vmem:[%s0 + $0x3c] sm:$0xf]
    %v58 = vld [vmem:[%s1] sm:$0xf]
    %v59 = vld [vmem:[%s2] sm:$0x1]
    %v61 = vlaneseq
    %v62 = vshrl.u32 %v61, 7
    %v63 = vsub.s32 0, %v62
    %v64 = vrot.slane %v59, %v63
    %v82 = vunpack.c.l.b16 %v42
    %v83 = vunpack.c.l.b16 %v43
    %v84 = vunpack.c.l.b16 %v44
    %v85 = vunpack.c.l.b16 %v45
    %v86 = vunpack.c.l.b16 %v46
    %v87 = vunpack.c.l.b16 %v47
    %v88 = vunpack.c.l.b16 %v48
    %v89 = vunpack.c.l.b16 %v49
    %v90 = vunpack.c.l.b16 %v50
    %v91 = vunpack.c.l.b16 %v51
    %v92 = vunpack.c.l.b16 %v52
    %v93 = vunpack.c.l.b16 %v53
    %v94 = vunpack.c.l.b16 %v54
    %v95 = vunpack.c.l.b16 %v55
    %v96 = vunpack.c.l.b16 %v56
    %v97 = vunpack.c.l.b16 %v57
    %v98 = vpack.c.b16 %v83, %v82
    %v99 = vpack.c.b16 %v85, %v84
    %v100 = vpack.c.b16 %v87, %v86
    %v101 = vpack.c.b16 %v89, %v88
    %v102 = vpack.c.b16 %v91, %v90
    %v103 = vpack.c.b16 %v93, %v92
    %v104 = vpack.c.b16 %v95, %v94
    %v105 = vpack.c.b16 %v97, %v96
    %vm106 = vcmask 64512
    %v108 = vsel %vm106, %v98, 0
    %v111 = vsel %vm106, %v99, 0
    %v114 = vsel %vm106, %v100, 0
    %v117 = vsel %vm106, %v101, 0
    %v120 = vsel %vm106, %v102, 0
    %v123 = vsel %vm106, %v103, 0
    %v126 = vsel %vm106, %v104, 0
    %v129 = vsel %vm106, %v105, 0
    %vm131 = vcmask 1043456
    %v133 = vsel %vm131, %v58, 0
    %135 = vmatprep.subr.bf16.mxu0 0
    %136 = vmatpush1.bf16.msra.mxu0 %v133
    %137 = vmatprep.subr.bf16.mxu0 0
    %138 = vmatpush1.bf16.msra.mxu0 0
    %139 = vmatprep.subr.bf16.mxu0 0
    %140 = vmatpush1.bf16.msra.mxu0 0
    %141 = vmatprep.subr.bf16.mxu0 0
    %142 = vmatpush1.bf16.msra.mxu0 0
    %143 = vmatprep.subr.bf16.mxu0 0
    %144 = vmatpush1.bf16.msra.mxu0 0
    %145 = vmatprep.subr.bf16.mxu0 0
    %146 = vmatpush1.bf16.msra.mxu0 0
    %147 = vmatprep.subr.bf16.mxu0 0
    %148 = vmatpush1.bf16.msra.mxu0 0
    %149 = vmatprep.subr.bf16.mxu0 0
    %150 = vmatpush1.bf16.msra.mxu0 0
    %151 = vmatprep.subr.bf16.mxu0 0
    %152 = vmatpush1.bf16.msra.mxu0 0
    %153 = vmatprep.subr.bf16.mxu0 0
    %154 = vmatpush1.bf16.msra.mxu0 0
    %155 = vmatprep.subr.bf16.mxu0 0
    %156 = vmatpush1.bf16.msra.mxu0 0
    %157 = vmatprep.subr.bf16.mxu0 0
    %158 = vmatpush1.bf16.msra.mxu0 0
    %159 = vmatprep.subr.bf16.mxu0 0
    %160 = vmatpush1.bf16.msra.mxu0 0
    %161 = vmatprep.subr.bf16.mxu0 0
    %162 = vmatpush1.bf16.msra.mxu0 0
    %163 = vmatprep.subr.bf16.mxu0 0
    %164 = vmatpush1.bf16.msra.mxu0 0
    %165 = vmatprep.subr.bf16.mxu0 0
    %166 = vmatpush1.bf16.msra.mxu0 0
    %167 = vmatprep.mubr.bf16.mxu0 0
    %168 = vmatmul.mubr.bf16.gmra.mrb[0].mxu0 %v108
    %v169 = vpop.f32.mrb[0].mxu0
    %v170 = vadd.f32 %v64, %v169
    %v171 = vpop.f32.mrb[0].mxu0
    %v172 = vpop.f32.mrb[0].mxu0
    %v173 = vadd.f32 %v64, %v172
    %v174 = vpop.f32.mrb[0].mxu0
    %175 = vmatprep.mubr.bf16.mxu0 0
    %176 = vmatmul.mubr.bf16.gmra.mrb[0].mxu0 %v111
    %v177 = vpop.f32.mrb[0].mxu0
    %v178 = vadd.f32 %v64, %v177
    %v179 = vpop.f32.mrb[0].mxu0
    %v180 = vpop.f32.mrb[0].mxu0
    %v181 = vadd.f32 %v64, %v180
    %v182 = vpop.f32.mrb[0].mxu0
    %183 = vmatprep.mubr.bf16.mxu0 0
    %184 = vmatmul.mubr.bf16.gmra.mrb[0].mxu0 %v114
    %v185 = vpop.f32.mrb[0].mxu0
    %v186 = vadd.f32 %v64, %v185
    %v187 = vpop.f32.mrb[0].mxu0
    %v188 = vpop.f32.mrb[0].mxu0
    %v189 = vadd.f32 %v64, %v188
    %v190 = vpop.f32.mrb[0].mxu0
    %191 = vmatprep.mubr.bf16.mxu0 0
    %192 = vmatmul.mubr.bf16.gmra.mrb[0].mxu0 %v117
    %v193 = vpop.f32.mrb[0].mxu0
    %v194 = vadd.f32 %v64, %v193
    %v195 = vpop.f32.mrb[0].mxu0
    %v196 = vpop.f32.mrb[0].mxu0
    %v197 = vadd.f32 %v64, %v196
    %v198 = vpop.f32.mrb[0].mxu0
    %199 = vmatprep.mubr.bf16.mxu0 0
    %200 = vmatmul.mubr.bf16.gmra.mrb[0].mxu0 %v120
    %v201 = vpop.f32.mrb[0].mxu0
    %v202 = vadd.f32 %v64, %v201
    %v203 = vpop.f32.mrb[0].mxu0
    %v204 = vpop.f32.mrb[0].mxu0
    %v205 = vadd.f32 %v64, %v204
    %v206 = vpop.f32.mrb[0].mxu0
    %207 = vmatprep.mubr.bf16.mxu0 0
    %208 = vmatmul.mubr.bf16.gmra.mrb[0].mxu0 %v123
    %v209 = vpop.f32.mrb[0].mxu0
    %v210 = vadd.f32 %v64, %v209
    %v211 = vpop.f32.mrb[0].mxu0
    %v212 = vpop.f32.mrb[0].mxu0
    %v213 = vadd.f32 %v64, %v212
    %v214 = vpop.f32.mrb[0].mxu0
    %215 = vmatprep.mubr.bf16.mxu0 0
    %216 = vmatmul.mubr.bf16.gmra.mrb[0].mxu0 %v126
    %v217 = vpop.f32.mrb[0].mxu0
    %v218 = vadd.f32 %v64, %v217
    %v219 = vpop.f32.mrb[0].mxu0
    %v220 = vpop.f32.mrb[0].mxu0
    %v221 = vadd.f32 %v64, %v220
    %v222 = vpop.f32.mrb[0].mxu0
    %223 = vmatprep.mubr.bf16.mxu0 0
    %224 = vmatmul.mubr.bf16.gmra.mrb[0].mxu0 %v129
    %v225 = vpop.f32.mrb[0].mxu0
    %v226 = vadd.f32 %v64, %v225
    %v227 = vpop.f32.mrb[0].mxu0
    %v228 = vpop.f32.mrb[0].mxu0
    %v229 = vadd.f32 %v64, %v228
    %v230 = vpop.f32.mrb[0].mxu0
    %231 = vdwg.mxu0
    %v232 = vmax.f32 %v170, 0.0
    %v233 = vmax.f32 %v173, 0.0
    %v234 = vmax.f32 %v178, 0.0
    %v235 = vmax.f32 %v181, 0.0
    %v236 = vmax.f32 %v186, 0.0
    %v237 = vmax.f32 %v189, 0.0
    %v238 = vmax.f32 %v194, 0.0
    %v239 = vmax.f32 %v197, 0.0
    %v240 = vmax.f32 %v202, 0.0
    %v241 = vmax.f32 %v205, 0.0
    %v242 = vmax.f32 %v210, 0.0
    %v243 = vmax.f32 %v213, 0.0
    %v244 = vmax.f32 %v218, 0.0
    %v245 = vmax.f32 %v221, 0.0
    %v246 = vmax.f32 %v226, 0.0
    %v247 = vmax.f32 %v229, 0.0
    %v248 = vpack.c.bf16 %v233, %v232
    %v249 = vpack.c.bf16 %v235, %v234
    %v250 = vpack.c.bf16 %v237, %v236
    %v251 = vpack.c.bf16 %v239, %v238
    %v252 = vpack.c.bf16 %v241, %v240
    %v253 = vpack.c.bf16 %v243, %v242
    %v254 = vpack.c.bf16 %v245, %v244
    %v255 = vpack.c.bf16 %v247, %v246
    %v256 = vld [vmem:[%s3] sm:$0xf]
    %v257 = vld [vmem:[%s3 + $0x4] sm:$0xf]
    %v258 = vld [vmem:[%s3 + $0x8] sm:$0xf]
    %v259 = vld [vmem:[%s3 + $0xc] sm:$0xf]
    %v260 = vld [vmem:[%s3 + $0x10] sm:$0xf]
    %v261 = vld [vmem:[%s3 + $0x14] sm:$0xf]
    %v262 = vld [vmem:[%s3 + $0x18] sm:$0xf]
    %v263 = vld [vmem:[%s3 + $0x1c] sm:$0xf]
    %v264 = vld [vmem:[%s3 + $0x20] sm:$0xf]
    %v265 = vld [vmem:[%s3 + $0x24] sm:$0xf]
    %v266 = vld [vmem:[%s3 + $0x28] sm:$0xf]
    %v267 = vld [vmem:[%s3 + $0x2c] sm:$0xf]
    %v268 = vld [vmem:[%s3 + $0x30] sm:$0xf]
    %v269 = vld [vmem:[%s3 + $0x34] sm:$0xf]
    %v270 = vld [vmem:[%s3 + $0x38] sm:$0xf]
    %v271 = vld [vmem:[%s3 + $0x3c] sm:$0xf]
    %v272 = vld [vmem:[%s4] sm:$0x1]
    %v274 = vlaneseq
    %v275 = vshrl.u32 %v274, 7
    %v276 = vsub.s32 0, %v275
    %v277 = vrot.slane %v272, %v276
    %v295 = vunpack.c.l.b16 %v256
    %v296 = vunpack.c.l.b16 %v257
    %v297 = vunpack.c.l.b16 %v258
    %v298 = vunpack.c.l.b16 %v259
    %v299 = vunpack.c.l.b16 %v260
    %v300 = vunpack.c.l.b16 %v261
    %v301 = vunpack.c.l.b16 %v262
    %v302 = vunpack.c.l.b16 %v263
    %v303 = vunpack.c.l.b16 %v264
    %v304 = vunpack.c.l.b16 %v265
    %v305 = vunpack.c.l.b16 %v266
    %v306 = vunpack.c.l.b16 %v267
    %v307 = vunpack.c.l.b16 %v268
    %v308 = vunpack.c.l.b16 %v269
    %v309 = vunpack.c.l.b16 %v270
    %v310 = vunpack.c.l.b16 %v271
    %v311 = vpack.c.b16 %v296, %v295
    %v312 = vpack.c.b16 %v298, %v297
    %v313 = vpack.c.b16 %v300, %v299
    %v314 = vpack.c.b16 %v302, %v301
    %v315 = vpack.c.b16 %v304, %v303
    %v316 = vpack.c.b16 %v306, %v305
    %v317 = vpack.c.b16 %v308, %v307
    %v318 = vpack.c.b16 %v310, %v309
    %327 = vmatprep.subr.bf16.mxu0 0
    %328 = vmatpush1.bf16.msra.mxu0 %v311
    %329 = vmatprep.subr.bf16.mxu0 0
    %330 = vmatpush1.bf16.msra.mxu0 %v312
    %331 = vmatprep.subr.bf16.mxu0 0
    %332 = vmatpush1.bf16.msra.mxu0 %v313
    %333 = vmatprep.subr.bf16.mxu0 0
    %334 = vmatpush1.bf16.msra.mxu0 %v314
    %335 = vmatprep.subr.bf16.mxu0 0
    %336 = vmatpush1.bf16.msra.mxu0 %v315
    %337 = vmatprep.subr.bf16.mxu0 0
    %338 = vmatpush1.bf16.msra.mxu0 %v316
    %339 = vmatprep.subr.bf16.mxu0 0
    %340 = vmatpush1.bf16.msra.mxu0 %v317
    %341 = vmatprep.subr.bf16.mxu0 0
    %342 = vmatpush1.bf16.msra.mxu0 %v318
    %343 = vmatprep.subr.bf16.mxu0 0
    %344 = vmatpush1.bf16.msra.mxu0 0
    %345 = vmatprep.subr.bf16.mxu0 0
    %346 = vmatpush1.bf16.msra.mxu0 0
    %347 = vmatprep.subr.bf16.mxu0 0
    %348 = vmatpush1.bf16.msra.mxu0 0
    %349 = vmatprep.subr.bf16.mxu0 0
    %350 = vmatpush1.bf16.msra.mxu0 0
    %351 = vmatprep.subr.bf16.mxu0 0
    %352 = vmatpush1.bf16.msra.mxu0 0
    %353 = vmatprep.subr.bf16.mxu0 0
    %354 = vmatpush1.bf16.msra.mxu0 0
    %355 = vmatprep.subr.bf16.mxu0 0
    %356 = vmatpush1.bf16.msra.mxu0 0
    %357 = vmatprep.subr.bf16.mxu0 0
    %358 = vmatpush1.bf16.msra.mxu0 0
    %359 = vmatprep.mubr.bf16.mxu0 0
    %360 = vmatmul.mubr.bf16.gmra.mrb[0].mxu0 %v248
    %v361 = vpop.f32.mrb[0].mxu0
    %v362 = vadd.f32 %v277, %v361
    %v363 = vpop.f32.mrb[0].mxu0
    %v364 = vpop.f32.mrb[0].mxu0
    %v365 = vadd.f32 %v277, %v364
    %v366 = vpop.f32.mrb[0].mxu0
    %367 = vmatprep.mubr.bf16.mxu0 0
    %368 = vmatmul.mubr.bf16.gmra.mrb[0].mxu0 %v249
    %v369 = vpop.f32.mrb[0].mxu0
    %v370 = vadd.f32 %v277, %v369
    %v371 = vpop.f32.mrb[0].mxu0
    %v372 = vpop.f32.mrb[0].mxu0
    %v373 = vadd.f32 %v277, %v372
    %v374 = vpop.f32.mrb[0].mxu0
    %375 = vmatprep.mubr.bf16.mxu0 0
    %376 = vmatmul.mubr.bf16.gmra.mrb[0].mxu0 %v250
    %v377 = vpop.f32.mrb[0].mxu0
    %v378 = vadd.f32 %v277, %v377
    %v379 = vpop.f32.mrb[0].mxu0
    %v380 = vpop.f32.mrb[0].mxu0
    %v381 = vadd.f32 %v277, %v380
    %v382 = vpop.f32.mrb[0].mxu0
    %383 = vmatprep.mubr.bf16.mxu0 0
    %384 = vmatmul.mubr.bf16.gmra.mrb[0].mxu0 %v251
    %v385 = vpop.f32.mrb[0].mxu0
    %v386 = vadd.f32 %v277, %v385
    %v387 = vpop.f32.mrb[0].mxu0
    %v388 = vpop.f32.mrb[0].mxu0
    %v389 = vadd.f32 %v277, %v388
    %v390 = vpop.f32.mrb[0].mxu0
    %391 = vmatprep.mubr.bf16.mxu0 0
    %392 = vmatmul.mubr.bf16.gmra.mrb[0].mxu0 %v252
    %v393 = vpop.f32.mrb[0].mxu0
    %v394 = vadd.f32 %v277, %v393
    %v395 = vpop.f32.mrb[0].mxu0
    %v396 = vpop.f32.mrb[0].mxu0
    %v397 = vadd.f32 %v277, %v396
    %v398 = vpop.f32.mrb[0].mxu0
    %399 = vmatprep.mubr.bf16.mxu0 0
    %400 = vmatmul.mubr.bf16.gmra.mrb[0].mxu0 %v253
    %v401 = vpop.f32.mrb[0].mxu0
    %v402 = vadd.f32 %v277, %v401
    %v403 = vpop.f32.mrb[0].mxu0
    %v404 = vpop.f32.mrb[0].mxu0
    %v405 = vadd.f32 %v277, %v404
    %v406 = vpop.f32.mrb[0].mxu0
    %407 = vmatprep.mubr.bf16.mxu0 0
    %408 = vmatmul.mubr.bf16.gmra.mrb[0].mxu0 %v254
    %v409 = vpop.f32.mrb[0].mxu0
    %v410 = vadd.f32 %v277, %v409
    %v411 = vpop.f32.mrb[0].mxu0
    %v412 = vpop.f32.mrb[0].mxu0
    %v413 = vadd.f32 %v277, %v412
    %v414 = vpop.f32.mrb[0].mxu0
    %415 = vmatprep.mubr.bf16.mxu0 0
    %416 = vmatmul.mubr.bf16.gmra.mrb[0].mxu0 %v255
    %v417 = vpop.f32.mrb[0].mxu0
    %v418 = vadd.f32 %v277, %v417
    %v419 = vpop.f32.mrb[0].mxu0
    %v420 = vpop.f32.mrb[0].mxu0
    %v421 = vadd.f32 %v277, %v420
    %v422 = vpop.f32.mrb[0].mxu0
    %423 = vdwg.mxu0
    %v424 = vmax.f32 %v362, 0.0
    %v425 = vmax.f32 %v365, 0.0
    %v426 = vmax.f32 %v370, 0.0
    %v427 = vmax.f32 %v373, 0.0
    %v428 = vmax.f32 %v378, 0.0
    %v429 = vmax.f32 %v381, 0.0
    %v430 = vmax.f32 %v386, 0.0
    %v431 = vmax.f32 %v389, 0.0
    %v432 = vmax.f32 %v394, 0.0
    %v433 = vmax.f32 %v397, 0.0
    %v434 = vmax.f32 %v402, 0.0
    %v435 = vmax.f32 %v405, 0.0
    %v436 = vmax.f32 %v410, 0.0
    %v437 = vmax.f32 %v413, 0.0
    %v438 = vmax.f32 %v418, 0.0
    %v439 = vmax.f32 %v421, 0.0
    %v440 = vpack.c.bf16 %v425, %v424
    %v441 = vpack.c.bf16 %v427, %v426
    %v442 = vpack.c.bf16 %v429, %v428
    %v443 = vpack.c.bf16 %v431, %v430
    %v444 = vpack.c.bf16 %v433, %v432
    %v445 = vpack.c.bf16 %v435, %v434
    %v446 = vpack.c.bf16 %v437, %v436
    %v447 = vpack.c.bf16 %v439, %v438
    %v448 = vld [vmem:[#allocation2] sm:$0xf]
    %v449 = vld [vmem:[#allocation2 + $0x4] sm:$0xf]
    %v450 = vld [vmem:[#allocation2 + $0x8] sm:$0xf]
    %v451 = vld [vmem:[#allocation2 + $0xc] sm:$0xf]
    %v452 = vld [vmem:[#allocation2 + $0x10] sm:$0xf]
    %v453 = vld [vmem:[#allocation2 + $0x14] sm:$0xf]
    %v454 = vld [vmem:[#allocation2 + $0x18] sm:$0xf]
    %v455 = vld [vmem:[#allocation2 + $0x1c] sm:$0xf]
    %v456 = vld [vmem:[#allocation2 + $0x20] sm:$0xf]
    %v457 = vld [vmem:[#allocation2 + $0x24] sm:$0xf]
    %v458 = vld [vmem:[#allocation2 + $0x28] sm:$0xf]
    %v459 = vld [vmem:[#allocation2 + $0x2c] sm:$0xf]
    %v460 = vld [vmem:[#allocation2 + $0x30] sm:$0xf]
    %v461 = vld [vmem:[#allocation2 + $0x34] sm:$0xf]
    %v462 = vld [vmem:[#allocation2 + $0x38] sm:$0xf]
    %v463 = vld [vmem:[#allocation2 + $0x3c] sm:$0xf]
    %v464 = vld [vmem:[%s6] sm:$0x1]
    %v466 = vlaneseq
    %v467 = vshrl.u32 %v466, 7
    %v468 = vsub.s32 0, %v467
    %v469 = vrot.slane %v464, %v468
    %v487 = vunpack.c.l.b16 %v448
    %v488 = vunpack.c.l.b16 %v449
    %v489 = vunpack.c.l.b16 %v450
    %v490 = vunpack.c.l.b16 %v451
    %v491 = vunpack.c.l.b16 %v452
    %v492 = vunpack.c.l.b16 %v453
    %v493 = vunpack.c.l.b16 %v454
    %v494 = vunpack.c.l.b16 %v455
    %v495 = vunpack.c.l.b16 %v456
    %v496 = vunpack.c.l.b16 %v457
    %v497 = vunpack.c.l.b16 %v458
    %v498 = vunpack.c.l.b16 %v459
    %v499 = vunpack.c.l.b16 %v460
    %v500 = vunpack.c.l.b16 %v461
    %v501 = vunpack.c.l.b16 %v462
    %v502 = vunpack.c.l.b16 %v463
    %v503 = vpack.c.b16 %v488, %v487
    %v504 = vpack.c.b16 %v490, %v489
    %v505 = vpack.c.b16 %v492, %v491
    %v506 = vpack.c.b16 %v494, %v493
    %v507 = vpack.c.b16 %v496, %v495
    %v508 = vpack.c.b16 %v498, %v497
    %v509 = vpack.c.b16 %v500, %v499
    %v510 = vpack.c.b16 %v502, %v501
    %519 = vmatprep.subr.bf16.mxu0 0
    %520 = vmatpush1.bf16.msra.mxu0 %v503
    %521 = vmatprep.subr.bf16.mxu0 0
    %522 = vmatpush1.bf16.msra.mxu0 %v504
    %523 = vmatprep.subr.bf16.mxu0 0
    %524 = vmatpush1.bf16.msra.mxu0 %v505
    %525 = vmatprep.subr.bf16.mxu0 0
    %526 = vmatpush1.bf16.msra.mxu0 %v506
    %527 = vmatprep.subr.bf16.mxu0 0
    %528 = vmatpush1.bf16.msra.mxu0 %v507
    %529 = vmatprep.subr.bf16.mxu0 0
    %530 = vmatpush1.bf16.msra.mxu0 %v508
    %531 = vmatprep.subr.bf16.mxu0 0
    %532 = vmatpush1.bf16.msra.mxu0 %v509
    %533 = vmatprep.subr.bf16.mxu0 0
    %534 = vmatpush1.bf16.msra.mxu0 %v510
    %535 = vmatprep.subr.bf16.mxu0 0
    %536 = vmatpush1.bf16.msra.mxu0 0
    %537 = vmatprep.subr.bf16.mxu0 0
    %538 = vmatpush1.bf16.msra.mxu0 0
    %539 = vmatprep.subr.bf16.mxu0 0
    %540 = vmatpush1.bf16.msra.mxu0 0
    %541 = vmatprep.subr.bf16.mxu0 0
    %542 = vmatpush1.bf16.msra.mxu0 0
    %543 = vmatprep.subr.bf16.mxu0 0
    %544 = vmatpush1.bf16.msra.mxu0 0
    %545 = vmatprep.subr.bf16.mxu0 0
    %546 = vmatpush1.bf16.msra.mxu0 0
    %547 = vmatprep.subr.bf16.mxu0 0
    %548 = vmatpush1.bf16.msra.mxu0 0
    %549 = vmatprep.subr.bf16.mxu0 0
    %550 = vmatpush1.bf16.msra.mxu0 0
    %551 = vmatprep.mubr.bf16.mxu0 0
    %552 = vmatmul.mubr.bf16.gmra.mrb[0].mxu0 %v440
    %v553 = vpop.f32.mrb[0].mxu0
    %v554 = vadd.f32 %v469, %v553
    %v555 = vpop.f32.mrb[0].mxu0
    %v556 = vpop.f32.mrb[0].mxu0
    %v557 = vadd.f32 %v469, %v556
    %v558 = vpop.f32.mrb[0].mxu0
    %559 = vmatprep.mubr.bf16.mxu0 0
    %560 = vmatmul.mubr.bf16.gmra.mrb[0].mxu0 %v441
    %v561 = vpop.f32.mrb[0].mxu0
    %v562 = vadd.f32 %v469, %v561
    %v563 = vpop.f32.mrb[0].mxu0
    %v564 = vpop.f32.mrb[0].mxu0
    %v565 = vadd.f32 %v469, %v564
    %v566 = vpop.f32.mrb[0].mxu0
    %567 = vmatprep.mubr.bf16.mxu0 0
    %568 = vmatmul.mubr.bf16.gmra.mrb[0].mxu0 %v442
    %v569 = vpop.f32.mrb[0].mxu0
    %v570 = vadd.f32 %v469, %v569
    %v571 = vpop.f32.mrb[0].mxu0
    %v572 = vpop.f32.mrb[0].mxu0
    %v573 = vadd.f32 %v469, %v572
    %v574 = vpop.f32.mrb[0].mxu0
    %575 = vmatprep.mubr.bf16.mxu0 0
    %576 = vmatmul.mubr.bf16.gmra.mrb[0].mxu0 %v443
    %v577 = vpop.f32.mrb[0].mxu0
    %v578 = vadd.f32 %v469, %v577
    %v579 = vpop.f32.mrb[0].mxu0
    %v580 = vpop.f32.mrb[0].mxu0
    %v581 = vadd.f32 %v469, %v580
    %v582 = vpop.f32.mrb[0].mxu0
    %583 = vmatprep.mubr.bf16.mxu0 0
    %584 = vmatmul.mubr.bf16.gmra.mrb[0].mxu0 %v444
    %v585 = vpop.f32.mrb[0].mxu0
    %v586 = vadd.f32 %v469, %v585
    %v587 = vpop.f32.mrb[0].mxu0
    %v588 = vpop.f32.mrb[0].mxu0
    %v589 = vadd.f32 %v469, %v588
    %v590 = vpop.f32.mrb[0].mxu0
    %591 = vmatprep.mubr.bf16.mxu0 0
    %592 = vmatmul.mubr.bf16.gmra.mrb[0].mxu0 %v445
    %v593 = vpop.f32.mrb[0].mxu0
    %v594 = vadd.f32 %v469, %v593
    %v595 = vpop.f32.mrb[0].mxu0
    %v596 = vpop.f32.mrb[0].mxu0
    %v597 = vadd.f32 %v469, %v596
    %v598 = vpop.f32.mrb[0].mxu0
    %599 = vmatprep.mubr.bf16.mxu0 0
    %600 = vmatmul.mubr.bf16.gmra.mrb[0].mxu0 %v446
    %v601 = vpop.f32.mrb[0].mxu0
    %v602 = vadd.f32 %v469, %v601
    %v603 = vpop.f32.mrb[0].mxu0
    %v604 = vpop.f32.mrb[0].mxu0
    %v605 = vadd.f32 %v469, %v604
    %v606 = vpop.f32.mrb[0].mxu0
    %607 = vmatprep.mubr.bf16.mxu0 0
    %608 = vmatmul.mubr.bf16.gmra.mrb[0].mxu0 %v447
    %v609 = vpop.f32.mrb[0].mxu0
    %v610 = vadd.f32 %v469, %v609
    %v611 = vpop.f32.mrb[0].mxu0
    %v612 = vpop.f32.mrb[0].mxu0
    %v613 = vadd.f32 %v469, %v612
    %v614 = vpop.f32.mrb[0].mxu0
    %615 = vdwg.mxu0
    %616 = vmax.xlane.f32.xlu0 %v554
    %v617 = vpop.xlane.xlu0 %616
    %618 = vmax.xlane.f32.xlu0 %v557
    %v619 = vpop.xlane.xlu0 %618
    %620 = vmax.xlane.f32.xlu0 %v562
    %v621 = vpop.xlane.xlu0 %620
    %622 = vmax.xlane.f32.xlu0 %v565
    %v623 = vpop.xlane.xlu0 %622
    %624 = vmax.xlane.f32.xlu0 %v570
    %v625 = vpop.xlane.xlu0 %624
    %626 = vmax.xlane.f32.xlu0 %v573
    %v627 = vpop.xlane.xlu0 %626
    %628 = vmax.xlane.f32.xlu0 %v578
    %v629 = vpop.xlane.xlu0 %628
    %630 = vmax.xlane.f32.xlu0 %v581
    %v631 = vpop.xlane.xlu0 %630
    %632 = vmax.xlane.f32.xlu0 %v586
    %v633 = vpop.xlane.xlu0 %632
    %634 = vmax.xlane.f32.xlu0 %v589
    %v635 = vpop.xlane.xlu0 %634
    %636 = vmax.xlane.f32.xlu0 %v594
    %v637 = vpop.xlane.xlu0 %636
    %638 = vmax.xlane.f32.xlu0 %v597
    %v639 = vpop.xlane.xlu0 %638
    %640 = vmax.xlane.f32.xlu0 %v602
    %v641 = vpop.xlane.xlu0 %640
    %642 = vmax.xlane.f32.xlu0 %v605
    %v643 = vpop.xlane.xlu0 %642
    %644 = vmax.xlane.f32.xlu0 %v610
    %v645 = vpop.xlane.xlu0 %644
    %646 = vmax.xlane.f32.xlu0 %v613
    %v647 = vpop.xlane.xlu0 %646
    %v648 = vsub.f32 %v554, %v617
    %v649 = vsub.f32 %v557, %v619
    %v650 = vsub.f32 %v562, %v621
    %v651 = vsub.f32 %v565, %v623
    %v652 = vsub.f32 %v570, %v625
    %v653 = vsub.f32 %v573, %v627
    %v654 = vsub.f32 %v578, %v629
    %v655 = vsub.f32 %v581, %v631
    %v656 = vsub.f32 %v586, %v633
    %v657 = vsub.f32 %v589, %v635
    %v658 = vsub.f32 %v594, %v637
    %v659 = vsub.f32 %v597, %v639
    %v660 = vsub.f32 %v602, %v641
    %v661 = vsub.f32 %v605, %v643
    %v662 = vsub.f32 %v610, %v645
    %v663 = vsub.f32 %v613, %v647
    %v664 = vmul.f32 %v648, 1.442695
    %v665 = vpow.pop %v664
    %v666 = vmul.f32 %v649, 1.442695
    %v667 = vpow.pop %v666
    %v668 = vmul.f32 %v650, 1.442695
    %v669 = vpow.pop %v668
    %v670 = vmul.f32 %v651, 1.442695
    %v671 = vpow.pop %v670
    %v672 = vmul.f32 %v652, 1.442695
    %v673 = vpow.pop %v672
    %v674 = vmul.f32 %v653, 1.442695
    %v675 = vpow.pop %v674
    %v676 = vmul.f32 %v654, 1.442695
    %v677 = vpow.pop %v676
    %v678 = vmul.f32 %v655, 1.442695
    %v679 = vpow.pop %v678
    %v680 = vmul.f32 %v656, 1.442695
    %v681 = vpow.pop %v680
    %v682 = vmul.f32 %v657, 1.442695
    %v683 = vpow.pop %v682
    %v684 = vmul.f32 %v658, 1.442695
    %v685 = vpow.pop %v684
    %v686 = vmul.f32 %v659, 1.442695
    %v687 = vpow.pop %v686
    %v688 = vmul.f32 %v660, 1.442695
    %v689 = vpow.pop %v688
    %v690 = vmul.f32 %v661, 1.442695
    %v691 = vpow.pop %v690
    %v692 = vmul.f32 %v662, 1.442695
    %v693 = vpow.pop %v692
    %v694 = vmul.f32 %v663, 1.442695
    %v695 = vpow.pop %v694
    %696 = vadd.xlane.f32.xlu0 %v665
    %v697 = vpop.xlane.xlu0 %696
    %698 = vadd.xlane.f32.xlu0 %v667
    %v699 = vpop.xlane.xlu0 %698
    %700 = vadd.xlane.f32.xlu0 %v669
    %v701 = vpop.xlane.xlu0 %700
    %702 = vadd.xlane.f32.xlu0 %v671
    %v703 = vpop.xlane.xlu0 %702
    %704 = vadd.xlane.f32.xlu0 %v673
    %v705 = vpop.xlane.xlu0 %704
    %706 = vadd.xlane.f32.xlu0 %v675
    %v707 = vpop.xlane.xlu0 %706
    %708 = vadd.xlane.f32.xlu0 %v677
    %v709 = vpop.xlane.xlu0 %708
    %710 = vadd.xlane.f32.xlu0 %v679
    %v711 = vpop.xlane.xlu0 %710
    %712 = vadd.xlane.f32.xlu0 %v681
    %v713 = vpop.xlane.xlu0 %712
    %714 = vadd.xlane.f32.xlu0 %v683
    %v715 = vpop.xlane.xlu0 %714
    %716 = vadd.xlane.f32.xlu0 %v685
    %v717 = vpop.xlane.xlu0 %716
    %718 = vadd.xlane.f32.xlu0 %v687
    %v719 = vpop.xlane.xlu0 %718
    %720 = vadd.xlane.f32.xlu0 %v689
    %v721 = vpop.xlane.xlu0 %720
    %722 = vadd.xlane.f32.xlu0 %v691
    %v723 = vpop.xlane.xlu0 %722
    %724 = vadd.xlane.f32.xlu0 %v693
    %v725 = vpop.xlane.xlu0 %724
    %726 = vadd.xlane.f32.xlu0 %v695
    %v727 = vpop.xlane.xlu0 %726
    %v728 = vrcp.pop %v697
    %v729 = vmul.f32 %v665, %v728
    %v730 = vrcp.pop %v699
    %v731 = vmul.f32 %v667, %v730
    %v732 = vrcp.pop %v701
    %v733 = vmul.f32 %v669, %v732
    %v734 = vrcp.pop %v703
    %v735 = vmul.f32 %v671, %v734
    %v736 = vrcp.pop %v705
    %v737 = vmul.f32 %v673, %v736
    %v738 = vrcp.pop %v707
    %v739 = vmul.f32 %v675, %v738
    %v740 = vrcp.pop %v709
    %v741 = vmul.f32 %v677, %v740
    %v742 = vrcp.pop %v711
    %v743 = vmul.f32 %v679, %v742
    %v744 = vrcp.pop %v713
    %v745 = vmul.f32 %v681, %v744
    %v746 = vrcp.pop %v715
    %v747 = vmul.f32 %v683, %v746
    %v748 = vrcp.pop %v717
    %v749 = vmul.f32 %v685, %v748
    %v750 = vrcp.pop %v719
    %v751 = vmul.f32 %v687, %v750
    %v752 = vrcp.pop %v721
    %v753 = vmul.f32 %v689, %v752
    %v754 = vrcp.pop %v723
    %v755 = vmul.f32 %v691, %v754
    %v756 = vrcp.pop %v725
    %v757 = vmul.f32 %v693, %v756
    %v758 = vrcp.pop %v727
    %v759 = vmul.f32 %v695, %v758
    %760 = vst [vmem:[#allocation5] sm:$0xff] %v729
    %761 = vst [vmem:[#allocation5 + $0x8] sm:$0xff] %v731
    %762 = vst [vmem:[#allocation5 + $0x10] sm:$0xff] %v733
    %763 = vst [vmem:[#allocation5 + $0x18] sm:$0xff] %v735
    %764 = vst [vmem:[#allocation5 + $0x20] sm:$0xff] %v737
    %765 = vst [vmem:[#allocation5 + $0x28] sm:$0xff] %v739
    %766 = vst [vmem:[#allocation5 + $0x30] sm:$0xff] %v741
    %767 = vst [vmem:[#allocation5 + $0x38] sm:$0xff] %v743
    %768 = vst [vmem:[#allocation5 + $0x40] sm:$0xff] %v745
    %769 = vst [vmem:[#allocation5 + $0x48] sm:$0xff] %v747
    %770 = vst [vmem:[#allocation5 + $0x50] sm:$0xff] %v749
    %771 = vst [vmem:[#allocation5 + $0x58] sm:$0xff] %v751
    %772 = vst [vmem:[#allocation5 + $0x60] sm:$0xff] %v753
    %773 = vst [vmem:[#allocation5 + $0x68] sm:$0xff] %v755
    %774 = vst [vmem:[#allocation5 + $0x70] sm:$0xff] %v757
    %775 = vst [vmem:[#allocation5 + $0x78] sm:$0xff] %v759
    // Predicated region
    $region34: #{tpu_custom_call.1} parent=1 // pred_check
      _
    $region35: #{tpu_custom_call.1} parent=1 // pred_check_branch
      %777 = sbr.rel (0) target = $region37
    $region36: #{tpu_custom_call.1} parent=1 // pred_region
      %s779 = ssub.s32 2048, 2048
      %780 = vsyncadd [#allocation4], %s779
      %s781 = sshll.u32 [#allocation5], 4
      %s782 = int_to_ptr.vmem [resolvable:$true] %s781
      %787 = dma.vmem_to_hbm [thread:$0]  %s782, 2048, %s7, [#allocation4], 128, 128, 8
    $region37: #{tpu_custom_call.1} parent=1 // pred_fallthru
      _
    // Predicated region
    $region38: #{tpu_custom_call.1} parent=1 // pred_check
      _
    $region39: #{tpu_custom_call.1} parent=1 // pred_check_branch
      %789 = sbr.rel (0) target = $region41
    $region40: #{tpu_custom_call.1} parent=1 // pred_region
      %790 = dma.done [#allocation4], 2048
    $region41: #{tpu_custom_call.1} parent=1 // pred_fallthru
      _
    %791 = vsyncpa [#allocation3], 1
    %792 = vsyncpa [#allocation4], 1

</llo_original>
